<compile_context>
chip_gen: v5e
topology: v5e:2x2
jax: 0.10.0
libtpu: 0.0.40
codegen_flags: <defaults>
</compile_context>

<pallas_src>
import math

import jax
import jax.numpy as jnp
from jax.experimental import pallas as pl
from jax.experimental.pallas import tpu as pltpu


def _round_up(x, m):
    return ((x + m - 1) // m) * m


def _select_q_tile(size, ladder, align):
    """Tile for the resident (query) axis: minimize the number of q tiles
    (= number of K/V streaming passes), then padding, then prefer larger."""
    size_a = _round_up(size, align)
    cap = max(ladder)
    cands = {_round_up(min(t, size_a), align) for t in ladder}
    if size_a <= cap:
        cands.add(size_a)
    best_key, best = None, None
    for t in sorted(cands, reverse=True):
        padded = _round_up(size_a, t)
        key = (padded // t, padded, -t)
        if best_key is None or key < best_key:
            best_key, best = key, (t, padded)
    return best


def _select_k_tile(size, ladder, align):
    """Tile for the streamed (key/value) axis: minimize padding, prefer larger
    tiles (fewer per-step overheads / acc rescale passes)."""
    size_a = _round_up(size, align)
    cap = max(ladder)
    cands = {_round_up(min(t, size_a), align) for t in ladder}
    if size_a <= cap:
        cands.add(size_a)
    best_key, best = None, None
    for t in sorted(cands, reverse=True):
        padded = _round_up(size_a, t)
        key = (padded, -t)
        if best_key is None or key < best_key:
            best_key, best = key, (t, padded)
    return best


def _make_mhsa_kernel(sk_actual, tk, need_k_mask, p_dtype):
    """Build the flash-attention style kernel body (all args are static)."""

    def kernel(q_ref, k_ref, v_ref, o_ref, m_sc, l_sc, acc_sc):
        kv = pl.program_id(2)

        @pl.when(kv == 0)
        def _():
            m_sc[...] = jnp.full(m_sc.shape, -jnp.inf, dtype=m_sc.dtype)
            l_sc[...] = jnp.zeros(l_sc.shape, dtype=l_sc.dtype)
            acc_sc[...] = jnp.zeros(acc_sc.shape, dtype=acc_sc.dtype)

        # QK^T on the MXU with f32 accumulation, contracting the last dims of
        # both tiles (no materialized K transpose): (tq, Dk) x (tk, Dk)^T.
        s = jax.lax.dot_general(
            q_ref[...], k_ref[...],
            dimension_numbers=(((1,), (1,)), ((), ())),
            preferred_element_type=jnp.float32)                 # (tq, tk)

        if need_k_mask:
            # Scalar per-tile limit: >= tk for every tile except the last one,
            # so only padded key columns (at the very end of Sk) get masked.
            limit = sk_actual - kv * tk
            col = jax.lax.broadcasted_iota(jnp.int32, s.shape, 1)
            s = jnp.where(col < limit, s, jnp.float32(-1e30))

        # Online softmax update (running stats in f32).
        m_prev = m_sc[...]
        m_new = jnp.maximum(m_prev, jnp.max(s, axis=-1, keepdims=True))
        alpha = jnp.exp(m_prev - m_new)
        # Unnormalized probabilities; bf16 exp for bf16 inputs (bf16 EUP on
        # v6e/v7x), f32 otherwise.
        p = jnp.exp((s - m_new).astype(p_dtype))

        l_sc[...] = alpha * l_sc[...] + jnp.sum(
            p, axis=-1, keepdims=True, dtype=jnp.float32)
        acc_sc[...] = alpha * acc_sc[...] + jnp.dot(
            p.astype(v_ref.dtype), v_ref[...],
            preferred_element_type=jnp.float32)
        m_sc[...] = m_new

        @pl.when(kv == pl.num_programs(2) - 1)
        def _():
            inv_l = pl.reciprocal(l_sc[...], approx=False)
            o_ref[...] = (acc_sc[...] * inv_l).astype(o_ref.dtype)

    return kernel


def mhsa(q, k, v):
    """softmax(q @ k^T / sqrt(Dk)) @ v for q:(...,Sq,Dk), k:(...,Sk,Dk), v:(...,Sk,Dv)."""
    lead = q.shape[:-2]
    Sq, Dk = q.shape[-2:]
    Sk, Dv = v.shape[-2:]
    B = 1
    for d in lead:
        B *= int(d)
    B = max(B, 1)

    out_dtype = q.dtype
    scale = 1.0 / math.sqrt(float(Dk))

    # Fold the softmax scale into q once here (one small pass over Q that XLA
    # fuses with the reshape/pad), instead of per kv-step inside the kernel.
    qf = q.reshape(B, Sq, Dk) * scale
    kf = k.reshape(B, Sk, Dk)
    vf = v.reshape(B, Sk, Dv)

    # Tile selection: sublane alignment depends on dtype packing
    # (f32 -> 8, bf16/f16 -> 16, int8/fp8 -> 32).
    itemsize = jnp.dtype(q.dtype).itemsize
    sublane = max(8, 8 * (4 // max(1, itemsize)))
    tq, Sq_p = _select_q_tile(Sq, (512, 384, 256, 128), sublane)
    tk, Sk_p = _select_k_tile(Sk, (1024, 512, 256, 128), 8)

    if Sq_p != Sq:
        qf = jnp.pad(qf, ((0, 0), (0, Sq_p - Sq), (0, 0)))
    if Sk_p != Sk:
        kf = jnp.pad(kf, ((0, 0), (0, Sk_p - Sk), (0, 0)))
        vf = jnp.pad(vf, ((0, 0), (0, Sk_p - Sk), (0, 0)))

    p_dtype = jnp.bfloat16 if q.dtype == jnp.bfloat16 else jnp.float32
    kernel = _make_mhsa_kernel(Sk, tk, need_k_mask=(Sk_p != Sk), p_dtype=p_dtype)

    grid = (B, Sq_p // tq, Sk_p // tk)
    out = pl.pallas_call(
        kernel,
        out_shape=jax.ShapeDtypeStruct((B, Sq_p, Dv), out_dtype),
        grid_spec=pltpu.PrefetchScalarGridSpec(
            num_scalar_prefetch=0,
            grid=grid,
            in_specs=[
                pl.BlockSpec((None, tq, Dk), lambda b, qi, ki: (b, qi, 0)),
                pl.BlockSpec((None, tk, Dk), lambda b, qi, ki: (b, ki, 0)),
                pl.BlockSpec((None, tk, Dv), lambda b, qi, ki: (b, ki, 0)),
            ],
            out_specs=pl.BlockSpec((None, tq, Dv), lambda b, qi, ki: (b, qi, 0)),
            scratch_shapes=[
                pltpu.VMEM((tq, 1), jnp.float32),    # running row max m
                pltpu.VMEM((tq, 1), jnp.float32),    # running row sum l
                pltpu.VMEM((tq, Dv), jnp.float32),   # output accumulator
            ],
        ),
        compiler_params=pltpu.CompilerParams(
            dimension_semantics=("parallel", "parallel", "arbitrary"),
            vmem_limit_bytes=48 * 1024 * 1024,
        ),
    )(qf, kf, vf)

    out = out[:, :Sq, :]
    return out.reshape(*lead, Sq, Dv)


def _mhsa_ref(q, k, v):
    dk = k.shape[-1]
    qf = q.astype(jnp.float32)
    kf = k.astype(jnp.float32)
    vf = v.astype(jnp.float32)
    logits = jnp.einsum("...qd,...kd->...qk", qf, kf) / jnp.sqrt(jnp.float32(dk))
    p = jax.nn.softmax(logits, axis=-1)
    return jnp.einsum("...qk,...kd->...qd", p, vf).astype(q.dtype)


if __name__ == "__main__":
    key = jax.random.PRNGKey(0)
    kq, kk, kv = jax.random.split(key, 3)

    # small shapes: batch=2, heads=2, seq=8, head_dim=32
    B, H, S, D = 2, 2, 8, 32
    q = jax.random.normal(kq, (B, H, S, D), dtype=jnp.float32)
    k = jax.random.normal(kk, (B, H, S, D), dtype=jnp.float32)
    v = jax.random.normal(kv, (B, H, S, D), dtype=jnp.float32)

    # f32 path
    out = mhsa(q, k, v)
    jax.block_until_ready(out)
    ref = _mhsa_ref(q, k, v)
    assert out.shape == (B, H, S, D)
    assert jnp.allclose(out, ref, atol=2e-3, rtol=2e-3)

    # bf16 fast-MXU path (native-dtype inputs, f32 accumulation, bf16 exp)
    qb, kb, vb = (x.astype(jnp.bfloat16) for x in (q, k, v))
    outb = mhsa(qb, kb, vb)
    jax.block_until_ready(outb)
    refb = _mhsa_ref(qb, kb, vb)
    assert outb.shape == (B, H, S, D)
    assert jnp.allclose(outb.astype(jnp.float32), refb.astype(jnp.float32),
                        atol=5e-2, rtol=5e-2)

    # awkward lengths: exercises q-row padding, Sk padding + last-tile mask,
    # and Sq != Sk / Dv != Dk.
    k2q, k2k, k2v = jax.random.split(jax.random.PRNGKey(1), 3)
    q2 = jax.random.normal(k2q, (1, 3, 12, 32), dtype=jnp.float32)
    k2 = jax.random.normal(k2k, (1, 3, 9, 32), dtype=jnp.float32)
    v2 = jax.random.normal(k2v, (1, 3, 9, 16), dtype=jnp.float32)
    out2 = mhsa(q2, k2, v2)
    jax.block_until_ready(out2)
    ref2 = _mhsa_ref(q2, k2, v2)
    assert out2.shape == (1, 3, 12, 16)
    assert jnp.allclose(out2, ref2, atol=2e-3, rtol=2e-3)

    print("KERNEL_OK")
</pallas_src>

<mosaic_0001>
module attributes {stable_mosaic.version = 11 : i64} {
  func.func @kernel(%arg0: i32, %arg1: i32, %arg2: i32, %arg3: memref<1x8x32xf32, #tpu.memory_space<vmem>>, %arg4: memref<1x8x32xf32, #tpu.memory_space<vmem>>, %arg5: memref<1x8x32xf32, #tpu.memory_space<vmem>>, %arg6: memref<1x8x32xf32, #tpu.memory_space<vmem>>, %arg7: memref<8x1xf32, #tpu.memory_space<vmem>>, %arg8: memref<8x1xf32, #tpu.memory_space<vmem>>, %arg9: memref<8x32xf32, #tpu.memory_space<vmem>>) attributes {dimension_semantics = [#tpu.dimension_semantics<parallel>, #tpu.dimension_semantics<parallel>, #tpu.dimension_semantics<arbitrary>], iteration_bounds = array<i64: 4, 1, 1>, scalar_prefetch = 0 : i64, scratch_operands = 3 : i64, tpu.core_type = #tpu.core_type<tc>, window_params = [{transform_indices = @transform_0, window_bounds = array<i64: 1, 8, 32>}, {transform_indices = @transform_1, window_bounds = array<i64: 1, 8, 32>}, {transform_indices = @transform_2, window_bounds = array<i64: 1, 8, 32>}, {transform_indices = @transform_3, window_bounds = array<i64: 1, 8, 32>}]} {
    %c0_i32 = arith.constant 0 : i32
    %0 = arith.cmpi eq, %arg2, %c0_i32 : i32
    %1 = arith.extui %0 : i1 to i32
    %c0_i32_0 = arith.constant 0 : i32
    %2 = arith.cmpi ne, %1, %c0_i32_0 : i32
    scf.if %2 {
      %cst_26 = arith.constant 0xFF800000 : f32
      %35 = vector.broadcast %cst_26 : f32 to vector<8x1xf32>
      %c0_27 = arith.constant 0 : index
      %c0_28 = arith.constant 0 : index
      %36 = vector.load %arg7[%c0_27, %c0_28] : memref<8x1xf32, #tpu.memory_space<vmem>>, vector<8x1xf32>
      tpu.vector_store %arg7[%c0_27, %c0_28], %35 {strides = array<i32>} : memref<8x1xf32, #tpu.memory_space<vmem>>, vector<8x1xf32>,
      %cst_29 = arith.constant 0.000000e+00 : f32
      %37 = vector.broadcast %cst_29 : f32 to vector<8x1xf32>
      %c0_30 = arith.constant 0 : index
      %c0_31 = arith.constant 0 : index
      %38 = vector.load %arg8[%c0_30, %c0_31] : memref<8x1xf32, #tpu.memory_space<vmem>>, vector<8x1xf32>
      tpu.vector_store %arg8[%c0_30, %c0_31], %37 {strides = array<i32>} : memref<8x1xf32, #tpu.memory_space<vmem>>, vector<8x1xf32>,
      %cst_32 = arith.constant 0.000000e+00 : f32
      %39 = vector.broadcast %cst_32 : f32 to vector<8x32xf32>
      %c0_33 = arith.constant 0 : index
      %c0_34 = arith.constant 0 : index
      %40 = vector.load %arg9[%c0_33, %c0_34] : memref<8x32xf32, #tpu.memory_space<vmem>>, vector<8x32xf32>
      tpu.vector_store %arg9[%c0_33, %c0_34], %39 {strides = array<i32>} : memref<8x32xf32, #tpu.memory_space<vmem>>, vector<8x32xf32>,
    } else {
    }
    %c0 = arith.constant 0 : index
    %c0_1 = arith.constant 0 : index
    %c0_2 = arith.constant 0 : index
    %3 = vector.load %arg3[%c0, %c0_1, %c0_2] : memref<1x8x32xf32, #tpu.memory_space<vmem>>, vector<1x8x32xf32>
    %4 = vector.shape_cast %3 : vector<1x8x32xf32> to vector<8x32xf32>
    %c0_3 = arith.constant 0 : index
    %c0_4 = arith.constant 0 : index
    %c0_5 = arith.constant 0 : index
    %5 = vector.load %arg4[%c0_3, %c0_4, %c0_5] : memref<1x8x32xf32, #tpu.memory_space<vmem>>, vector<1x8x32xf32>
    %6 = vector.shape_cast %5 : vector<1x8x32xf32> to vector<8x32xf32>
    %cst = arith.constant dense<0.000000e+00> : vector<8x8xf32>
    %7 = tpu.matmul %4, %6, %cst {dimension_numbers = #tpu.dot_dimension_numbers<[1], [1], [0], [0], [0, 0, 1, 0], [], []>} : vector<8x32xf32>, vector<8x32xf32>, vector<8x8xf32> -> vector<8x8xf32>
    %c0_6 = arith.constant 0 : index
    %c0_7 = arith.constant 0 : index
    %8 = vector.load %arg7[%c0_6, %c0_7] : memref<8x1xf32, #tpu.memory_space<vmem>>, vector<8x1xf32>
    %cst_8 = arith.constant dense<0xFF800000> : vector<8xf32>
    %9 = vector.multi_reduction <maximumf>, %7, %cst_8 [1] : vector<8x8xf32> to vector<8xf32>
    %10 = vector.shape_cast %9 : vector<8xf32> to vector<8x1xf32>
    %11 = arith.maximumf %8, %10 : vector<8x1xf32>
    %12 = arith.subf %8, %11 : vector<8x1xf32>
    %13 = math.exp %12 : vector<8x1xf32>
    %14 = vector.broadcast %11 : vector<8x1xf32> to vector<8x8xf32>
    %15 = arith.subf %7, %14 : vector<8x8xf32>
    %16 = math.exp %15 : vector<8x8xf32>
    %c0_9 = arith.constant 0 : index
    %c0_10 = arith.constant 0 : index
    %17 = vector.load %arg8[%c0_9, %c0_10] : memref<8x1xf32, #tpu.memory_space<vmem>>, vector<8x1xf32>
    %18 = arith.mulf %13, %17 : vector<8x1xf32>
    %cst_11 = arith.constant dense<0.000000e+00> : vector<8xf32>
    %19 = vector.multi_reduction <add>, %16, %cst_11 [1] : vector<8x8xf32> to vector<8xf32>
    %20 = vector.shape_cast %19 : vector<8xf32> to vector<8x1xf32>
    %21 = arith.addf %18, %20 : vector<8x1xf32>
    %c0_12 = arith.constant 0 : index
    %c0_13 = arith.constant 0 : index
    %22 = vector.load %arg8[%c0_12, %c0_13] : memref<8x1xf32, #tpu.memory_space<vmem>>, vector<8x1xf32>
    tpu.vector_store %arg8[%c0_12, %c0_13], %21 {strides = array<i32>} : memref<8x1xf32, #tpu.memory_space<vmem>>, vector<8x1xf32>,
    %c0_14 = arith.constant 0 : index
    %c0_15 = arith.constant 0 : index
    %23 = vector.load %arg9[%c0_14, %c0_15] : memref<8x32xf32, #tpu.memory_space<vmem>>, vector<8x32xf32>
    %24 = vector.broadcast %13 : vector<8x1xf32> to vector<8x32xf32>
    %25 = arith.mulf %24, %23 : vector<8x32xf32>
    %c0_16 = arith.constant 0 : index
    %c0_17 = arith.constant 0 : index
    %c0_18 = arith.constant 0 : index
    %26 = vector.load %arg5[%c0_16, %c0_17, %c0_18] : memref<1x8x32xf32, #tpu.memory_space<vmem>>, vector<1x8x32xf32>
    %27 = vector.shape_cast %26 : vector<1x8x32xf32> to vector<8x32xf32>
    %cst_19 = arith.constant dense<0.000000e+00> : vector<8x32xf32>
    %28 = tpu.matmul %16, %27, %cst_19 {dimension_numbers = #tpu.dot_dimension_numbers<[1], [0], [0], [1], [0, 0, 1, 1], [], []>} : vector<8x8xf32>, vector<8x32xf32>, vector<8x32xf32> -> vector<8x32xf32>
    %29 = arith.addf %25, %28 : vector<8x32xf32>
    %c0_20 = arith.constant 0 : index
    %c0_21 = arith.constant 0 : index
    %30 = vector.load %arg9[%c0_20, %c0_21] : memref<8x32xf32, #tpu.memory_space<vmem>>, vector<8x32xf32>
    tpu.vector_store %arg9[%c0_20, %c0_21], %29 {strides = array<i32>} : memref<8x32xf32, #tpu.memory_space<vmem>>, vector<8x32xf32>,
    %c0_22 = arith.constant 0 : index
    %c0_23 = arith.constant 0 : index
    %31 = vector.load %arg7[%c0_22, %c0_23] : memref<8x1xf32, #tpu.memory_space<vmem>>, vector<8x1xf32>
    tpu.vector_store %arg7[%c0_22, %c0_23], %11 {strides = array<i32>} : memref<8x1xf32, #tpu.memory_space<vmem>>, vector<8x1xf32>,
    %c0_i32_24 = arith.constant 0 : i32
    %32 = arith.cmpi eq, %arg2, %c0_i32_24 : i32
    %33 = arith.extui %32 : i1 to i32
    %c0_i32_25 = arith.constant 0 : i32
    %34 = arith.cmpi ne, %33, %c0_i32_25 : i32
    scf.if %34 {
      %c0_26 = arith.constant 0 : index
      %c0_27 = arith.constant 0 : index
      %35 = vector.load %arg8[%c0_26, %c0_27] : memref<8x1xf32, #tpu.memory_space<vmem>>, vector<8x1xf32>
      %36 = tpu.reciprocal %35 : vector<8x1xf32> -> vector<8x1xf32>
      %c0_28 = arith.constant 0 : index
      %c0_29 = arith.constant 0 : index
      %37 = vector.load %arg9[%c0_28, %c0_29] : memref<8x32xf32, #tpu.memory_space<vmem>>, vector<8x32xf32>
      %38 = vector.broadcast %36 : vector<8x1xf32> to vector<8x32xf32>
      %39 = arith.mulf %37, %38 : vector<8x32xf32>
      %c0_30 = arith.constant 0 : index
      %c0_31 = arith.constant 0 : index
      %c0_32 = arith.constant 0 : index
      %40 = vector.load %arg6[%c0_30, %c0_31, %c0_32] : memref<1x8x32xf32, #tpu.memory_space<vmem>>, vector<1x8x32xf32>
      %41 = vector.shape_cast %40 : vector<1x8x32xf32> to vector<8x32xf32>
      %42 = vector.shape_cast %39 : vector<8x32xf32> to vector<1x8x32xf32>
      tpu.vector_store %arg6[%c0_30, %c0_31, %c0_32], %42 {strides = array<i32>} : memref<1x8x32xf32, #tpu.memory_space<vmem>>, vector<1x8x32xf32>,
    } else {
    }
    return
  }
  func.func @transform_0(%arg0: i32, %arg1: i32, %arg2: i32) -> (i32, i32, i32) {
    %c0_i32 = arith.constant 0 : i32
    %c0_i32_0 = arith.constant 0 : i32
    return %arg0, %arg1, %c0_i32 : i32, i32, i32
  }
  func.func @transform_1(%arg0: i32, %arg1: i32, %arg2: i32) -> (i32, i32, i32) {
    %c0_i32 = arith.constant 0 : i32
    %c0_i32_0 = arith.constant 0 : i32
    return %arg0, %arg2, %c0_i32 : i32, i32, i32
  }
  func.func @transform_2(%arg0: i32, %arg1: i32, %arg2: i32) -> (i32, i32, i32) {
    %c0_i32 = arith.constant 0 : i32
    %c0_i32_0 = arith.constant 0 : i32
    return %arg0, %arg2, %c0_i32 : i32, i32, i32
  }
  func.func @transform_3(%arg0: i32, %arg1: i32, %arg2: i32) -> (i32, i32, i32) {
    %c0_i32 = arith.constant 0 : i32
    %c0_i32_0 = arith.constant 0 : i32
    return %arg0, %arg1, %c0_i32 : i32, i32, i32
  }
}

</mosaic_0001>

<llo_original>
// kernel: tpu_custom_call.1
$region0: #{tpu_custom_call.1}
  #allocation0 [shape = 'u32[]', space=smem, size = 0x4, offset = 0x4, fixed_abs, tag = 'smem constant byte address 0x4 - core index']
  #allocation1 [shape = 'u32[72,128]{1,0:T(1,128)}', space=vmem, size = 0x9000, scoped, tag = 'internal scratch']
  #allocation2 [shape = 'f32[8,1]{1,0:T(8,128)}', space=vmem, size = 0x1000, scoped, tag = 'scratch operand']
  #allocation3 [shape = 'f32[8,1]{1,0:T(8,128)}', space=vmem, size = 0x1000, scoped, tag = 'scratch operand']
  #allocation4 [shape = 'f32[8,32]{1,0:T(8,128)}', space=vmem, size = 0x1000, scoped, tag = 'scratch operand']
  %s0 = inlined_call_operand.hbm [shape: f32[4,8,32], index: 0, kind: input, shape index: {}]
  %s1 = inlined_call_operand.hbm [shape: f32[4,8,32], index: 1, kind: input, shape index: {}]
  %s2 = inlined_call_operand.hbm [shape: f32[4,8,32], index: 2, kind: input, shape index: {}]
  %s3 = inlined_call_operand.hbm [shape: f32[4,8,32], index: 3, kind: output, shape index: {}]
  %s4 = sld [smem:[#allocation0]]
  $region65: #{tpu_custom_call.1} parent=0
    _
  %s6 = ssub.s32 1, %s4
  %s7 = scalar_select 0, %s6, %s4
  $region1: #{tpu_custom_call.1} parent=0
    #allocation5 [shape = 'u8[8192]{0}', space=vmem, size = 0x2000, scoped, tag = 'input window, operand 0']
    #allocation6 [shape = 's32[2]{0}', space=sflag, size = 0x8, scoped, tag = 'scoped memory for tpu_custom_call.1']
    #allocation7 [shape = 's32[2]{0}', space=sflag, size = 0x8, scoped, tag = 'scoped memory for tpu_custom_call.1']
    #allocation8 [shape = 'u8[8192]{0}', space=vmem, size = 0x2000, scoped, tag = 'input window, operand 1']
    #allocation9 [shape = 's32[2]{0}', space=sflag, size = 0x8, scoped, tag = 'scoped memory for tpu_custom_call.1']
    #allocation10 [shape = 'u8[8192]{0}', space=vmem, size = 0x2000, scoped, tag = 'input window, operand 2']
    #allocation11 [shape = 'u8[8192]{0}', space=vmem, size = 0x2000, scoped, tag = 'output window, operand 0']
    %8 = vsyncpa [#allocation6], 0
    %s9 = scalar_lea.sflag [#allocation6], 1
    %10 = vsyncpa %s9, 0
    %11 = vsyncpa [#allocation9], 0
    %s12 = scalar_lea.sflag [#allocation9], 1
    %13 = vsyncpa %s12, 0
    %14 = vsyncpa [#allocation7], 0
    %s15 = scalar_lea.sflag [#allocation7], 1
    %16 = vsyncpa %s15, 0
    loop: start=0, step=1, limit=6
    $region2: #{tpu_custom_call.1} parent=1 // loop_pre_header
      _
    $region3: #{tpu_custom_call.1} parent=1 // loop_header
      %s18 = sphi 0, %s22
      %p19 = scmp.ge.s32.totalorder %s18, 6
      %s25 = sphi 0, %s44
      %s26 = sphi 0, %s40
      %s27 = sphi 0, %s36
      %s28 = sphi 0, %s25
      %s29 = sphi 0, %s26
      %s30 = sphi 0, %s27
      %s31 = sphi 0, %s28
      %s32 = sphi 0, %s29
      %s33 = sphi 0, %s30
      %s49 = sphi 0, %s51
      %s52 = sphi 0, %s49
      %s53 = sphi 0, %s52
      %s69 = sphi 0, %s53
      %s77 = sphi 0, %s79
      %s80 = sphi 0, %s77
      %s81 = sphi 0, %s80
      %s97 = sphi 0, %s81
      %s105 = sphi 0, %s107
      %s108 = sphi 0, %s105
      %s109 = sphi 0, %s108
      %s125 = sphi 0, %s109
      %s133 = sphi 0, %s135
      %s136 = sphi 0, %s133
      %s137 = sphi 0, %s136
      %s153 = sphi 0, %s137
    $region4: #{tpu_custom_call.1} parent=1 // loop_header_branch
      %21 = sbr.rel (%p19) target = $region8
    $region5: #{tpu_custom_call.1} parent=1 // loop_body
      %s23 = ssub.s32 %s18, 1
      %s24 = ssub.s32 %s18, 2
      %s34 = sadd.s32 1, %s27
      %p35 = scmp.ge.s32.totalorder %s34, 1
      %s36 = scalar_select %p35, 0, %s34
      %s37 = sadd.s32 1, %s26
      %s38 = scalar_select %p35, %s37, %s26
      %p39 = scmp.ge.s32.totalorder %s38, 1
      %s40 = scalar_select %p39, 0, %s38
      %s41 = sadd.s32 1, %s25
      %s42 = scalar_select %p39, %s41, %s25
      %p43 = scmp.ge.s32.totalorder %s42, 4
      %s44 = scalar_select %p43, 0, %s42
      %s45 = ssub.s32 %s25, %s44
      %s46 = ssub.s32 %s26, %s40
      %s47 = sor.u32 %s45, %s46
      %p48 = scmp.eq.s32.totalorder %s47, 0
      %s50 = sadd.s32 %s49, 1
      %s51 = scalar_select %p48, %s49, %s50
      %p54 = pneg %p48
      %p55 = scmp.eq.s32.totalorder %s18, 3
      %p56 = por %p54, %p55
      %p57 = scmp.ne.s32.totalorder %s49, %s52
      %p58 = scmp.eq.s32.totalorder %s18, 0
      %p59 = por %p57, %p58
      %p60 = scmp.ne.s32.totalorder %s49, %s52
      %p61 = scmp.eq.s32.totalorder %s23, 3
      %p62 = por %p60, %p61
      %p63 = scmp.ne.s32.totalorder %s52, %s53
      %p64 = scmp.eq.s32.totalorder %s23, 0
      %p65 = por %p63, %p64
      %p66 = scmp.ne.s32.totalorder %s52, %s53
      %p67 = scmp.eq.s32.totalorder %s24, 3
      %p68 = por %p66, %p67
      %p70 = scmp.ne.s32.totalorder %s53, %s69
      %p71 = scmp.eq.s32.totalorder %s24, 0
      %p72 = por %p70, %p71
      %s73 = ssub.s32 %s25, %s44
      %s74 = ssub.s32 %s27, %s36
      %s75 = sor.u32 %s73, %s74
      %p76 = scmp.eq.s32.totalorder %s75, 0
      %s78 = sadd.s32 %s77, 1
      %s79 = scalar_select %p76, %s77, %s78
      %p82 = pneg %p76
      %p83 = scmp.eq.s32.totalorder %s18, 3
      %p84 = por %p82, %p83
      %p85 = scmp.ne.s32.totalorder %s77, %s80
      %p86 = scmp.eq.s32.totalorder %s18, 0
      %p87 = por %p85, %p86
      %p88 = scmp.ne.s32.totalorder %s77, %s80
      %p89 = scmp.eq.s32.totalorder %s23, 3
      %p90 = por %p88, %p89
      %p91 = scmp.ne.s32.totalorder %s80, %s81
      %p92 = scmp.eq.s32.totalorder %s23, 0
      %p93 = por %p91, %p92
      %p94 = scmp.ne.s32.totalorder %s80, %s81
      %p95 = scmp.eq.s32.totalorder %s24, 3
      %p96 = por %p94, %p95
      %p98 = scmp.ne.s32.totalorder %s81, %s97
      %p99 = scmp.eq.s32.totalorder %s24, 0
      %p100 = por %p98, %p99
      %s101 = ssub.s32 %s25, %s44
      %s102 = ssub.s32 %s27, %s36
      %s103 = sor.u32 %s101, %s102
      %p104 = scmp.eq.s32.totalorder %s103, 0
      %s106 = sadd.s32 %s105, 1
      %s107 = scalar_select %p104, %s105, %s106
      %p110 = pneg %p104
      %p111 = scmp.eq.s32.totalorder %s18, 3
      %p112 = por %p110, %p111
      %p113 = scmp.ne.s32.totalorder %s105, %s108
      %p114 = scmp.eq.s32.totalorder %s18, 0
      %p115 = por %p113, %p114
      %p116 = scmp.ne.s32.totalorder %s105, %s108
      %p117 = scmp.eq.s32.totalorder %s23, 3
      %p118 = por %p116, %p117
      %p119 = scmp.ne.s32.totalorder %s108, %s109
      %p120 = scmp.eq.s32.totalorder %s23, 0
      %p121 = por %p119, %p120
      %p122 = scmp.ne.s32.totalorder %s108, %s109
      %p123 = scmp.eq.s32.totalorder %s24, 3
      %p124 = por %p122, %p123
      %p126 = scmp.ne.s32.totalorder %s109, %s125
      %p127 = scmp.eq.s32.totalorder %s24, 0
      %p128 = por %p126, %p127
      %s129 = ssub.s32 %s25, %s44
      %s130 = ssub.s32 %s26, %s40
      %s131 = sor.u32 %s129, %s130
      %p132 = scmp.eq.s32.totalorder %s131, 0
      %s134 = sadd.s32 %s133, 1
      %s135 = scalar_select %p132, %s133, %s134
      %p138 = pneg %p132
      %p139 = scmp.eq.s32.totalorder %s18, 3
      %p140 = por %p138, %p139
      %p141 = scmp.ne.s32.totalorder %s133, %s136
      %p142 = scmp.eq.s32.totalorder %s18, 0
      %p143 = por %p141, %p142
      %p144 = scmp.ne.s32.totalorder %s133, %s136
      %p145 = scmp.eq.s32.totalorder %s23, 3
      %p146 = por %p144, %p145
      %p147 = scmp.ne.s32.totalorder %s136, %s137
      %p148 = scmp.eq.s32.totalorder %s23, 0
      %p149 = por %p147, %p148
      %p150 = scmp.ne.s32.totalorder %s136, %s137
      %p151 = scmp.eq.s32.totalorder %s24, 3
      %p152 = por %p150, %p151
      %p154 = scmp.ne.s32.totalorder %s137, %s153
      %p155 = scmp.eq.s32.totalorder %s24, 0
      %p156 = por %p154, %p155
      %p157 = scmp.le.s32.totalorder 1, %s18
      %p158 = scmp.lt.s32.totalorder %s18, 5
      %p159 = pnand %p157, %p158
      %p160 = pneg %p159
      // Predicated region
      $region9: #{tpu_custom_call.1} parent=5 // pred_check
        _
      $region10: #{tpu_custom_call.1} parent=5 // pred_check_branch
        %162 = sbr.rel (%p159) target = $region12
      $region11: #{tpu_custom_call.1} parent=5 // pred_region
        %s163 = ssub.s32 %s18, 1
      $region12: #{tpu_custom_call.1} parent=5 // pred_fallthru
        _
      %p164 = scmp.lt.s32.totalorder %s18, 4
      // Predicated region
      $region13: #{tpu_custom_call.1} parent=5 // pred_check
        %p165 = pneg %p164
      $region14: #{tpu_custom_call.1} parent=5 // pred_check_branch
        %167 = sbr.rel (%p165) target = $region16
      $region15: #{tpu_custom_call.1} parent=5 // pred_region
        // Predicated region
        $region17: #{tpu_custom_call.1} parent=15 // pred_check
          %p168 = pneg %p59
        $region18: #{tpu_custom_call.1} parent=15 // pred_check_branch
          %170 = sbr.rel (%p168) target = $region20
        $region19: #{tpu_custom_call.1} parent=15 // pred_region
          %s171 = sand.u32 %s49, 1
          %s172 = scalar_lea.sflag [#allocation6], %s171
          %s173 = sand.u32 %s49, 1
          %s174 = smul.addr %s173, 8
          %s175 = scalar_lea.vmem [#allocation5], %s174
          %177 = vsyncadd %s172, 0
          %s178 = sadd.s32 %s26, %s25
          %s179 = smul.addr %s178, 8
          %s180 = scalar_lea.hbm %s0, %s179
          %s182 = sshll.u32 %s180, 4
          %s183 = int_to_ptr.hbm [resolvable:$true] %s182
          %s184 = sshll.u32 %s175, 4
          %s185 = int_to_ptr.vmem [resolvable:$true] %s184
          %187 = dma.hbm_to_vmem [thread:$0]  %s183, 128, %s185, %s172
        $region20: #{tpu_custom_call.1} parent=15 // pred_fallthru
          _
        // Predicated region
        $region21: #{tpu_custom_call.1} parent=15 // pred_check
          %p188 = pneg %p87
        $region22: #{tpu_custom_call.1} parent=15 // pred_check_branch
          %190 = sbr.rel (%p188) target = $region24
        $region23: #{tpu_custom_call.1} parent=15 // pred_region
          %s191 = sand.u32 %s18, 1
          %s192 = scalar_lea.sflag [#allocation9], %s191
          %s193 = sand.u32 %s77, 1
          %s194 = smul.addr %s193, 8
          %s195 = scalar_lea.vmem [#allocation8], %s194
          %197 = vsyncadd %s192, 0
          %s198 = sadd.s32 %s27, %s25
          %s199 = smul.addr %s198, 8
          %s200 = scalar_lea.hbm %s1, %s199
          %s202 = sshll.u32 %s200, 4
          %s203 = int_to_ptr.hbm [resolvable:$true] %s202
          %s204 = sshll.u32 %s195, 4
          %s205 = int_to_ptr.vmem [resolvable:$true] %s204
          %207 = dma.hbm_to_vmem [thread:$0]  %s203, 128, %s205, %s192
        $region24: #{tpu_custom_call.1} parent=15 // pred_fallthru
          _
        // Predicated region
        $region25: #{tpu_custom_call.1} parent=15 // pred_check
          %p208 = pneg %p115
        $region26: #{tpu_custom_call.1} parent=15 // pred_check_branch
          %210 = sbr.rel (%p208) target = $region28
        $region27: #{tpu_custom_call.1} parent=15 // pred_region
          %s211 = sand.u32 %s18, 1
          %s212 = scalar_lea.sflag [#allocation9], %s211
          %s213 = sand.u32 %s105, 1
          %s214 = smul.addr %s213, 8
          %s215 = scalar_lea.vmem [#allocation10], %s214
          %217 = vsyncadd %s212, 0
          %s218 = sadd.s32 %s27, %s25
          %s219 = smul.addr %s218, 8
          %s220 = scalar_lea.hbm %s2, %s219
          %s222 = sshll.u32 %s220, 4
          %s223 = int_to_ptr.hbm [resolvable:$true] %s222
          %s224 = sshll.u32 %s215, 4
          %s225 = int_to_ptr.vmem [resolvable:$true] %s224
          %227 = dma.hbm_to_vmem [thread:$0]  %s223, 128, %s225, %s212
        $region28: #{tpu_custom_call.1} parent=15 // pred_fallthru
          _
      $region16: #{tpu_custom_call.1} parent=5 // pred_fallthru
        _
      %p228 = scmp.le.s32.totalorder 1, %s18
      %p229 = scmp.lt.s32.totalorder %s18, 5
      %p230 = pnand %p228, %p229
      %p231 = pneg %p230
      // Predicated region
      $region29: #{tpu_custom_call.1} parent=5 // pred_check
        _
      $region30: #{tpu_custom_call.1} parent=5 // pred_check_branch
        %233 = sbr.rel (%p230) target = $region32
      $region31: #{tpu_custom_call.1} parent=5 // pred_region
        %s234 = ssub.s32 %s18, 1
        %s235 = sand.u32 %s52, 1
        %s236 = scalar_lea.sflag [#allocation6], %s235
        %s237 = sand.u32 %s52, 1
        %s238 = smul.addr %s237, 8
        %s239 = scalar_lea.vmem [#allocation5], %s238
        // Predicated region
        $region33: #{tpu_custom_call.1} parent=31 // pred_check
          %p240 = pneg %p65
        $region34: #{tpu_custom_call.1} parent=31 // pred_check_branch
          %242 = sbr.rel (%p240) target = $region36
        $region35: #{tpu_custom_call.1} parent=31 // pred_region
          %244 = dma.done %s236, 128
        $region36: #{tpu_custom_call.1} parent=31 // pred_fallthru
          _
        %s245 = sand.u32 %s23, 1
        %s246 = scalar_lea.sflag [#allocation9], %s245
        %s247 = sand.u32 %s80, 1
        %s248 = smul.addr %s247, 8
        %s249 = scalar_lea.vmem [#allocation8], %s248
        // Predicated region
        $region37: #{tpu_custom_call.1} parent=31 // pred_check
          %p250 = pneg %p93
        $region38: #{tpu_custom_call.1} parent=31 // pred_check_branch
          %252 = sbr.rel (%p250) target = $region40
        $region39: #{tpu_custom_call.1} parent=31 // pred_region
          %254 = dma.done %s246, 128
        $region40: #{tpu_custom_call.1} parent=31 // pred_fallthru
          _
        %s255 = sand.u32 %s23, 1
        %s256 = scalar_lea.sflag [#allocation9], %s255
        %s257 = sand.u32 %s108, 1
        %s258 = smul.addr %s257, 8
        %s259 = scalar_lea.vmem [#allocation10], %s258
        // Predicated region
        $region41: #{tpu_custom_call.1} parent=31 // pred_check
          %p260 = pneg %p121
        $region42: #{tpu_custom_call.1} parent=31 // pred_check_branch
          %262 = sbr.rel (%p260) target = $region44
        $region43: #{tpu_custom_call.1} parent=31 // pred_region
          %264 = dma.done %s256, 128
        $region44: #{tpu_custom_call.1} parent=31 // pred_fallthru
          _
        %s265 = sand.u32 %s52, 1
        %s266 = scalar_lea.sflag [#allocation6], %s265
        %s267 = sand.u32 %s52, 1
        %s268 = smul.addr %s267, 8
        %s269 = scalar_lea.vmem [#allocation5], %s268
        %p270 = pneg %p65
        %p271 = pneg %p62
        %s272 = sand.u32 %s23, 1
        %s273 = scalar_lea.sflag [#allocation9], %s272
        %s274 = sand.u32 %s80, 1
        %s275 = smul.addr %s274, 8
        %s276 = scalar_lea.vmem [#allocation8], %s275
        %p277 = pneg %p93
        %p278 = pneg %p90
        %s279 = sand.u32 %s23, 1
        %s280 = scalar_lea.sflag [#allocation9], %s279
        %s281 = sand.u32 %s108, 1
        %s282 = smul.addr %s281, 8
        %s283 = scalar_lea.vmem [#allocation10], %s282
        %p284 = pneg %p121
        %p285 = pneg %p118
        %p286 = pneg %p149
        %p287 = pneg %p146
        %s288 = sand.u32 %s136, 1
        %s289 = scalar_lea.sflag [#allocation7], %s288
        %s290 = sand.u32 %s136, 1
        %s291 = smul.addr %s290, 8
        %s292 = scalar_lea.vmem [#allocation11], %s291
        %p293 = scmp.eq.s32.totalorder %s30, 0
        // Predicated region
        $region45: #{tpu_custom_call.1} parent=31 // pred_check
          %p294 = pneg %p293
        $region46: #{tpu_custom_call.1} parent=31 // pred_check_branch
          %296 = sbr.rel (%p294) target = $region48
        $region47: #{tpu_custom_call.1} parent=31 // pred_region
          %vm297 = vcmask 7168
          %298 = vst.msk [vmem:[#allocation2] sm:$0xff] %vm297, -inf
          %299 = vst.msk [vmem:[#allocation3] sm:$0xff] %vm297, 0.0
          %vm300 = vcmask 261120
          %301 = vst.msk [vmem:[#allocation4] sm:$0xff] %vm300, 0.0
        $region48: #{tpu_custom_call.1} parent=31 // pred_fallthru
          _
        %v302 = vld [vmem:[%s239] sm:$0xff]
        %v303 = vld [vmem:[%s249] sm:$0xff]
        %vm304 = vcmask 261120
        %v306 = vsel %vm304, %v302, 0
        %v309 = vsel %vm304, %v303, 0
        %311 = vmatpush.xpose.msra.mxu0 0.0
        %312 = vmatpush.xpose.msra.mxu0 0.0
        %313 = vmatpush.xpose.msra.mxu0 0.0
        %314 = vmatpush.xpose.msra.mxu0 0.0
        %315 = vmatpush.xpose.msra.mxu0 0.0
        %316 = vmatpush.xpose.msra.mxu0 0.0
        %317 = vmatpush.xpose.msra.mxu0 0.0
        %318 = vmatpush.xpose.msra.mxu0 0.0
        %319 = vmatpush.xpose.msra.mxu0 0.0
        %320 = vmatpush.xpose.msra.mxu0 0.0
        %321 = vmatpush.xpose.msra.mxu0 0.0
        %322 = vmatpush.xpose.msra.mxu0 0.0
        %323 = vmatpush.xpose.msra.mxu0 0.0
        %324 = vmatpush.xpose.msra.mxu0 0.0
        %325 = vmatpush.xpose.msra.mxu0 0.0
        %326 = vmatpush.xpose.msra.mxu0 %v309
        %327 = vmatmul.f32.gmra.mxu0 %v306
        %v328 = vpop.f32.mrf.mxu0
        %v329 = vadd.f32 0.0, %v328
        %330 = vdwg.mxu0
        %v331 = vld [vmem:[#allocation2] sm:$0xff]
        %vm332 = vcmask 64512
        %v333 = vsel %vm332, %v329, -inf
        %334 = vmax.xlane.f32.xlu0 %v333
        %v335 = vpop.xlane.xlu0 %334
        %v336 = vmax.f32 %v331, %v335
        %v337 = vsub.f32 %v331, %v336
        %v338 = vmul.f32 %v337, 1.442695
        %v339 = vpow.pop %v338
        %341 = vset.pattern.permute.xlu0 0
        %342 = vperm.xlu0 %341, %v336
        %v343 = vpop.permute.xlu0 %342
        %v345 = vsub.f32 %v329, %v343
        %v346 = vmul.f32 %v345, 1.442695
        %v347 = vpow.pop %v346
        %v348 = vld [vmem:[#allocation3] sm:$0xff]
        %v349 = vmul.f32 %v339, %v348
        %v350 = vsel %vm332, %v347, 0.0
        %351 = vadd.xlane.f32.xlu0 %v350
        %v352 = vpop.xlane.xlu0 %351
        %v353 = vadd.f32 %v349, %v352
        %vm354 = vcmask 7168
        %355 = vst.msk [vmem:[#allocation3] sm:$0xff] %vm354, %v353
        %v356 = vld [vmem:[#allocation4] sm:$0xff]
        %358 = vset.pattern.permute.xlu0 0
        %359 = vperm.xlu0 %358, %v339
        %v360 = vpop.permute.xlu0 %359
        %v362 = vmul.f32 %v360, %v356
        %v363 = vld [vmem:[%s259] sm:$0xff]
        %v365 = vsel %vm332, %v347, 0
        %367 = vmatpush.msra.mxu0 0.0
        %368 = vmatpush.msra.mxu0 0.0
        %369 = vmatpush.msra.mxu0 0.0
        %370 = vmatpush.msra.mxu0 0.0
        %371 = vmatpush.msra.mxu0 0.0
        %372 = vmatpush.msra.mxu0 0.0
        %373 = vmatpush.msra.mxu0 0.0
        %374 = vmatpush.msra.mxu0 0.0
        %375 = vmatpush.msra.mxu0 0.0
        %376 = vmatpush.msra.mxu0 0.0
        %377 = vmatpush.msra.mxu0 0.0
        %378 = vmatpush.msra.mxu0 0.0
        %379 = vmatpush.msra.mxu0 0.0
        %380 = vmatpush.msra.mxu0 0.0
        %381 = vmatpush.msra.mxu0 0.0
        %382 = vmatpush.msra.mxu0 %v363
        %383 = vmatmul.f32.gmra.mxu0 %v365
        %v384 = vpop.f32.mrf.mxu0
        %v385 = vadd.f32 0.0, %v384
        %386 = vdwg.mxu0
        %v387 = vadd.f32 %v362, %v385
        %388 = vst.msk [vmem:[#allocation4] sm:$0xff] %vm304, %v387
        %389 = vst.msk [vmem:[#allocation2] sm:$0xff] %vm354, %v336
        // Predicated region
        $region49: #{tpu_custom_call.1} parent=31 // pred_check
          %p390 = pneg %p293
        $region50: #{tpu_custom_call.1} parent=31 // pred_check_branch
          %392 = sbr.rel (%p390) target = $region52
        $region51: #{tpu_custom_call.1} parent=31 // pred_region
          %v393 = vld [vmem:[#allocation3] sm:$0xff]
          %v394 = vrcp.pop %v393
          %v395 = vmul.f32 %v393, %v394
          %v396 = vsub.f32 1.0, %v395
          %v397 = vmul.f32 %v394, %v396
          %v398 = vadd.f32 %v394, %v397
          %vm399 = vweird.f32 %v393
          %vm400 = vweird.f32 %v394
          %vm401 = vmor %vm399, %vm400
          %v402 = vsel %vm401, %v394, %v398
          %v403 = vand.u32 2147483647, %v393
          %vm404 = vcmp.eq.f32.partialorder %v403, 8.507059e+37
          %v405 = vand.u32 %v393, 2147483648
          %v406 = vor.u32 1.1754944e-38, %v405
          %v407 = vsel %vm404, %v406, %v402
          %v408 = vld [vmem:[#allocation4] sm:$0xff]
          %410 = vset.pattern.permute.xlu0 0
          %411 = vperm.xlu0 %410, %v407
          %v412 = vpop.permute.xlu0 %411
          %v414 = vmul.f32 %v408, %v412
          %415 = vst.msk [vmem:[%s292] sm:$0xff] %vm304, %v414
        $region52: #{tpu_custom_call.1} parent=31 // pred_fallthru
          _
        %s416 = sand.u32 %s136, 1
        %s417 = scalar_lea.sflag [#allocation7], %s416
        %s418 = sand.u32 %s136, 1
        %s419 = smul.addr %s418, 8
        %s420 = scalar_lea.vmem [#allocation11], %s419
        // Predicated region
        $region53: #{tpu_custom_call.1} parent=31 // pred_check
          %p421 = pneg %p146
        $region54: #{tpu_custom_call.1} parent=31 // pred_check_branch
          %423 = sbr.rel (%p421) target = $region56
        $region55: #{tpu_custom_call.1} parent=31 // pred_region
          %425 = vsyncadd %s417, 0
          %s426 = sadd.s32 %s29, %s28
          %s427 = smul.addr %s426, 8
          %s428 = scalar_lea.hbm %s3, %s427
          %s430 = sshll.u32 %s420, 4
          %s431 = int_to_ptr.vmem [resolvable:$true] %s430
          %s432 = sshll.u32 %s428, 4
          %s433 = int_to_ptr.hbm [resolvable:$true] %s432
          %435 = dma.vmem_to_hbm [thread:$0]  %s431, 128, %s433, %s417
        $region56: #{tpu_custom_call.1} parent=31 // pred_fallthru
          _
      $region32: #{tpu_custom_call.1} parent=5 // pred_fallthru
        _
      %p436 = scmp.le.s32.totalorder 2, %s18
      // Predicated region
      $region57: #{tpu_custom_call.1} parent=5 // pred_check
        %p437 = pneg %p436
      $region58: #{tpu_custom_call.1} parent=5 // pred_check_branch
        %439 = sbr.rel (%p437) target = $region60
      $region59: #{tpu_custom_call.1} parent=5 // pred_region
        %s440 = ssub.s32 %s18, 2
        // Predicated region
        $region61: #{tpu_custom_call.1} parent=59 // pred_check
          %p441 = pneg %p152
        $region62: #{tpu_custom_call.1} parent=59 // pred_check_branch
          %443 = sbr.rel (%p441) target = $region64
        $region63: #{tpu_custom_call.1} parent=59 // pred_region
          %s444 = sand.u32 %s137, 1
          %s445 = scalar_lea.sflag [#allocation7], %s444
          %s446 = sand.u32 %s137, 1
          %s447 = smul.addr %s446, 8
          %s448 = scalar_lea.vmem [#allocation11], %s447
          %450 = dma.done %s445, 128
        $region64: #{tpu_custom_call.1} parent=59 // pred_fallthru
          _
      $region60: #{tpu_custom_call.1} parent=5 // pred_fallthru
        _
    $region6: #{tpu_custom_call.1} parent=1 // loop_footer
      %s22 = sadd.s32 1, %s18
    $region7: #{tpu_custom_call.1} parent=1 // loop_footer_branch
      %17 = sbr.rel target = $region3
    $region8: #{tpu_custom_call.1} parent=1 // loop_exit
      _
    %451 = vsyncpa [#allocation6], 1
    %s452 = scalar_lea.sflag [#allocation6], 1
    %453 = vsyncpa %s452, 1
    %454 = vsyncpa [#allocation9], 1
    %s455 = scalar_lea.sflag [#allocation9], 1
    %456 = vsyncpa %s455, 1
    %457 = vsyncpa [#allocation7], 1
    %s458 = scalar_lea.sflag [#allocation7], 1
    %459 = vsyncpa %s458, 1

</llo_original>
